<compile_context>
chip_gen: v7x
topology: tpu7x:2x2x1
jax: 0.10.0
libtpu: 0.0.40
codegen_flags: <defaults>
</compile_context>

<pallas_src>
import jax
import jax.numpy as jnp
from jax.experimental import pallas as pl
from jax.experimental.pallas import tpu as pltpu


def _embed_kernel(p_ref, w_ref, posb_ref, out_ref):
    # p_ref:    (N, D_in)   bf16  one batch's patch rows
    # w_ref:    (D_in, L)   bf16  projection weight (grid-invariant)
    # posb_ref: (N+1, L)    f32   row0 = class_token + pos[0] (no bias),
    #                             rows 1..N = pos[i] + bias   (grid-invariant)
    # out_ref:  (N+1, L)    f32   one batch's output rows
    posb = posb_ref[...]
    proj = jnp.dot(p_ref[...], w_ref[...],
                   preferred_element_type=jnp.float32)        # (N, L) f32
    n = proj.shape[0]
    # Rows 1..N: projected patches + (pos + bias).
    out_ref[pl.ds(1, n), :] = proj + posb[1:, :]
    # Row 0: class token + pos[0] (bias NOT applied).
    out_ref[pl.ds(0, 1), :] = posb[0:1, :]


def patch_extract(x, patch_size, dtype=jnp.bfloat16):
    """JAX equivalent of PatchExtractor.forward (NCHW input). Casts to bf16
    before the reshuffle so the HBM transpose moves half the bytes."""
    B, C, H, W = x.shape
    assert H % patch_size == 0 and W % patch_size == 0
    Hp, Wp = H // patch_size, W // patch_size
    x = x.astype(dtype)
    # (B,C,H,W) -> (B,C,Hp,P,Wp,P) -> (B,Hp,Wp,C,P,P) -> (B, N, C*P*P)
    x = x.reshape(B, C, Hp, patch_size, Wp, patch_size)
    x = jnp.transpose(x, (0, 2, 4, 1, 3, 5))
    return x.reshape(B, Hp * Wp, C * patch_size * patch_size)


def input_embedding(x, weight, bias, class_token, pos_embedding, patch_size):
    """x: (B, C, H, W) float32.  weight: (D_in, L) (transposed vs torch Linear).
    Returns (B, N+1, L) float32."""
    patches = patch_extract(x, patch_size)                   # (B, N, D_in) bf16
    B, N, D_in = patches.shape
    L = weight.shape[1]
    assert pos_embedding.shape[-2] >= N + 1, "pos_embedding too short"

    weight_bf = weight.astype(jnp.bfloat16)

    # (N+1, L) pos/bias/class-token table, built once, batch-invariant.
    pos = pos_embedding.reshape(-1, L)[: N + 1].astype(jnp.float32)
    posb = jnp.concatenate(
        [class_token.reshape(1, L).astype(jnp.float32) + pos[0:1, :],  # no bias
         pos[1:, :] + bias.reshape(1, L).astype(jnp.float32)],
        axis=0)                                               # (N+1, L)

    # Lane-pad L to a multiple of 128 so kernel stores are dense vst
    # (no-op for real ViT widths; demo L=32 -> 128).
    L_pad = -(-L // 128) * 128
    if L_pad != L:
        weight_bf = jnp.pad(weight_bf, ((0, 0), (0, L_pad - L)))
        posb = jnp.pad(posb, ((0, 0), (0, L_pad - L)))

    out = pl.pallas_call(
        _embed_kernel,
        out_shape=jax.ShapeDtypeStruct((B, N + 1, L_pad), jnp.float32),
        grid_spec=pltpu.PrefetchScalarGridSpec(
            num_scalar_prefetch=0,
            grid=(B,),
            in_specs=[
                # one batch's patches per step (full-dim block, no padding)
                pl.BlockSpec((None, N, D_in), lambda b: (b, 0, 0)),
                # weight and pos/bias table are invariant in b (read once)
                pl.BlockSpec((D_in, L_pad), lambda b: (0, 0)),
                pl.BlockSpec((N + 1, L_pad), lambda b: (0, 0)),
            ],
            out_specs=pl.BlockSpec((None, N + 1, L_pad), lambda b: (b, 0, 0)),
        ),
        compiler_params=pltpu.CompilerParams(
            # batch axis parallel: >=2 steps keeps both v7x TensorCores busy;
            # per-step VMEM is small, so the default scoped-VMEM limit is fine
            # on v5e/v6e/v7x alike.
            dimension_semantics=("parallel",)),
    )(patches, weight_bf, posb)

    if L_pad != L:
        out = out[:, :, :L]
    return out


if __name__ == "__main__":
    # Small config consistent with the module:
    # img_size=16, patch_size=8, n_channels=4, latent_size=32, batch=2
    B, C, H, W = 2, 4, 16, 16
    patch_size = 8
    latent_size = 32
    input_size = patch_size * patch_size * C                  # 256
    num_patches = (H // patch_size) * (W // patch_size)        # 4

    key = jax.random.PRNGKey(0)
    k_x, k_w, k_b, k_cls, k_pos = jax.random.split(key, 5)

    x = jax.random.normal(k_x, (B, C, H, W), dtype=jnp.float32)
    # nn.Linear(input_size, latent_size): torch stores (latent, input);
    # we keep the transposed (input, latent) layout for x @ W.
    weight = jax.random.normal(k_w, (input_size, latent_size),
                               dtype=jnp.float32) * 0.02
    bias = jax.random.normal(k_b, (latent_size,), dtype=jnp.float32) * 0.02
    class_token = jax.random.normal(k_cls, (1, 1, latent_size),
                                    dtype=jnp.float32)
    pos_embedding = jax.random.normal(k_pos, (1, num_patches + 1, latent_size),
                                      dtype=jnp.float32)

    out = input_embedding(x, weight, bias, class_token, pos_embedding,
                          patch_size)
    out = jax.block_until_ready(out)

    # Reference (same bf16-input / f32-accumulate matmul as the kernel).
    patches = patch_extract(x, patch_size)                    # bf16
    proj_ref = jnp.dot(patches, weight.astype(jnp.bfloat16),
                       preferred_element_type=jnp.float32) + bias
    ref = jnp.concatenate(
        [jnp.broadcast_to(class_token, (B, 1, latent_size)), proj_ref], axis=1)
    ref = ref + pos_embedding[:, : num_patches + 1]

    assert out.shape == (B, num_patches + 1, latent_size)
    assert jnp.allclose(out, ref, atol=1e-3, rtol=1e-3), "mismatch vs reference"

    print("KERNEL_OK")
</pallas_src>

<mosaic_0001>
module attributes {stable_mosaic.version = 11 : i64} {
  func.func @_embed_kernel(%arg0: i32, %arg1: memref<1x4x256xbf16, #tpu.memory_space<vmem>>, %arg2: memref<256x128xbf16, #tpu.memory_space<vmem>>, %arg3: memref<5x128xf32, #tpu.memory_space<vmem>>, %arg4: memref<1x5x128xf32, #tpu.memory_space<vmem>>) attributes {dimension_semantics = [#tpu.dimension_semantics<parallel>], iteration_bounds = array<i64: 2>, scalar_prefetch = 0 : i64, scratch_operands = 0 : i64, tpu.core_type = #tpu.core_type<tc>, window_params = [{transform_indices = @transform_0, window_bounds = array<i64: 1, 4, 256>}, {pipeline_mode = #tpu.pipeline_mode<synchronous>, transform_indices = @transform_1, window_bounds = array<i64: 256, 128>}, {pipeline_mode = #tpu.pipeline_mode<synchronous>, transform_indices = @transform_2, window_bounds = array<i64: 5, 128>}, {transform_indices = @transform_3, window_bounds = array<i64: 1, 5, 128>}]} {
    %c0 = arith.constant 0 : index
    %c0_0 = arith.constant 0 : index
    %0 = vector.load %arg3[%c0, %c0_0] : memref<5x128xf32, #tpu.memory_space<vmem>>, vector<5x128xf32>
    %c0_1 = arith.constant 0 : index
    %c0_2 = arith.constant 0 : index
    %c0_3 = arith.constant 0 : index
    %1 = vector.load %arg1[%c0_1, %c0_2, %c0_3] : memref<1x4x256xbf16, #tpu.memory_space<vmem>>, vector<1x4x256xbf16>
    %2 = vector.shape_cast %1 : vector<1x4x256xbf16> to vector<4x256xbf16>
    %c0_4 = arith.constant 0 : index
    %c0_5 = arith.constant 0 : index
    %3 = vector.load %arg2[%c0_4, %c0_5] : memref<256x128xbf16, #tpu.memory_space<vmem>>, vector<256x128xbf16>
    %cst = arith.constant dense<0.000000e+00> : vector<4x128xf32>
    %4 = tpu.matmul %2, %3, %cst {dimension_numbers = #tpu.dot_dimension_numbers<[1], [0], [0], [1], [0, 0, 1, 1], [], []>} : vector<4x256xbf16>, vector<256x128xbf16>, vector<4x128xf32> -> vector<4x128xf32>
    %5 = vector.extract_strided_slice %0 {offsets = [1, 0], sizes = [4, 128], strides = [1, 1]} : vector<5x128xf32> to vector<4x128xf32>
    %6 = arith.addf %4, %5 : vector<4x128xf32>
    %c0_6 = arith.constant 0 : index
    %c1 = arith.constant 1 : index
    %c0_7 = arith.constant 0 : index
    %7 = vector.load %arg4[%c0_6, %c1, %c0_7] : memref<1x5x128xf32, #tpu.memory_space<vmem>>, vector<1x4x128xf32>
    %8 = vector.shape_cast %7 : vector<1x4x128xf32> to vector<4x128xf32>
    %9 = vector.shape_cast %6 : vector<4x128xf32> to vector<1x4x128xf32>
    tpu.vector_store %arg4[%c0_6, %c1, %c0_7], %9 {strides = array<i32>} : memref<1x5x128xf32, #tpu.memory_space<vmem>>, vector<1x4x128xf32>,
    %10 = vector.extract_strided_slice %0 {offsets = [0, 0], sizes = [1, 128], strides = [1, 1]} : vector<5x128xf32> to vector<1x128xf32>
    %c0_8 = arith.constant 0 : index
    %c0_9 = arith.constant 0 : index
    %c0_10 = arith.constant 0 : index
    %11 = vector.load %arg4[%c0_8, %c0_9, %c0_10] : memref<1x5x128xf32, #tpu.memory_space<vmem>>, vector<1x1x128xf32>
    %12 = vector.shape_cast %11 : vector<1x1x128xf32> to vector<1x128xf32>
    %13 = vector.shape_cast %10 : vector<1x128xf32> to vector<1x1x128xf32>
    tpu.vector_store %arg4[%c0_8, %c0_9, %c0_10], %13 {strides = array<i32>} : memref<1x5x128xf32, #tpu.memory_space<vmem>>, vector<1x1x128xf32>,
    return
  }
  func.func @transform_0(%arg0: i32) -> (i32, i32, i32) {
    %c0_i32 = arith.constant 0 : i32
    %c0_i32_0 = arith.constant 0 : i32
    %c0_i32_1 = arith.constant 0 : i32
    return %arg0, %c0_i32, %c0_i32_0 : i32, i32, i32
  }
  func.func @transform_1(%arg0: i32) -> (i32, i32) {
    %c0_i32 = arith.constant 0 : i32
    %c0_i32_0 = arith.constant 0 : i32
    %c0_i32_1 = arith.constant 0 : i32
    return %c0_i32, %c0_i32_0 : i32, i32
  }
  func.func @transform_2(%arg0: i32) -> (i32, i32) {
    %c0_i32 = arith.constant 0 : i32
    %c0_i32_0 = arith.constant 0 : i32
    %c0_i32_1 = arith.constant 0 : i32
    return %c0_i32, %c0_i32_0 : i32, i32
  }
  func.func @transform_3(%arg0: i32) -> (i32, i32, i32) {
    %c0_i32 = arith.constant 0 : i32
    %c0_i32_0 = arith.constant 0 : i32
    %c0_i32_1 = arith.constant 0 : i32
    return %arg0, %c0_i32, %c0_i32_0 : i32, i32, i32
  }
}

</mosaic_0001>

<llo_original>
// kernel: tpu_custom_call.1
$region0: #{tpu_custom_call.1}
  #allocation0 [shape = 'u32[]', space=smem, size = 0x4, offset = 0x4, fixed_abs, tag = 'smem constant byte address 0x4 - core index']
  #allocation1 [shape = 'u32[144,128]{1,0:T(1,128)}', space=vmem, size = 0x12000, scoped, tag = 'internal scratch']
  %s0 = inlined_call_operand.hbm [shape: bf16[2,4,256], index: 0, kind: input, shape index: {}]
  %s1 = inlined_call_operand.hbm [shape: bf16[256,128], index: 1, kind: input, shape index: {}]
  %s2 = inlined_call_operand.hbm [shape: f32[5,128], index: 2, kind: input, shape index: {}]
  %s3 = inlined_call_operand.vmem [shape: f32[2,5,128], index: 3, kind: output, shape index: {}]
  %s4 = sld [smem:[#allocation0]]
  $region57: #{tpu_custom_call.1} parent=0
    _
  %s6 = ssub.s32 1, %s4
  %s7 = scalar_select 0, %s6, %s4
  $region1: #{tpu_custom_call.1} parent=0
    #allocation2 [shape = 'u8[4096]{0}', space=vmem, size = 0x1000, scoped, tag = 'input window, operand 0']
    #allocation3 [shape = 's32[2]{0}', space=sflag, size = 0x8, scoped, tag = 'scoped memory for tpu_custom_call.1']
    #allocation4 [shape = 'u8[65536]{0}', space=vmem, size = 0x10000, scoped, tag = 'input window, operand 1, single buffered']
    #allocation5 [shape = 's32[1]{0}', space=sflag, size = 0x4, scoped, tag = 'scoped memory for tpu_custom_call.1']
    #allocation6 [shape = 'u8[4096]{0}', space=vmem, size = 0x1000, scoped, tag = 'input window, operand 2, single buffered']
    %8 = vsyncpa [#allocation3], 0
    %s9 = scalar_lea.sflag [#allocation3], 1
    %10 = vsyncpa %s9, 0
    %11 = vsyncpa [#allocation5], 0
    loop: start=0, step=1, limit=4
    $region2: #{tpu_custom_call.1} parent=1 // loop_pre_header
      _
    $region3: #{tpu_custom_call.1} parent=1 // loop_header
      %s13 = sphi 0, %s17
      %p14 = scmp.ge.s32.totalorder %s13, 4
      %s23 = sphi 0, %s25
      %s26 = sphi 0, %s23
      %s27 = sphi 0, %s26
      %s43 = sphi 0, %s27
      %s47 = sphi 0, %s47
      %s49 = sphi 0, %s47
      %s50 = sphi 0, %s49
      %s64 = sphi 0, %s50
      %s68 = sphi 0, %s68
      %s70 = sphi 0, %s68
      %s71 = sphi 0, %s70
      %s85 = sphi 0, %s71
      %s91 = sphi 0, %s93
      %s94 = sphi 0, %s91
      %s95 = sphi 0, %s94
      %s111 = sphi 0, %s95
    $region4: #{tpu_custom_call.1} parent=1 // loop_header_branch
      %16 = sbr.rel (%p14) target = $region8
    $region5: #{tpu_custom_call.1} parent=1 // loop_body
      %s18 = ssub.s32 %s13, 1
      %s19 = ssub.s32 %s13, 2
      %s20 = sadd.s32 %s13, 1
      %s21 = ssub.s32 %s13, %s20
      %p22 = scmp.eq.s32.totalorder %s21, 0
      %s24 = sadd.s32 %s23, 1
      %s25 = scalar_select %p22, %s23, %s24
      %p28 = pneg %p22
      %p29 = scmp.eq.s32.totalorder %s13, 1
      %p30 = por %p28, %p29
      %p31 = scmp.ne.s32.totalorder %s23, %s26
      %p32 = scmp.eq.s32.totalorder %s13, 0
      %p33 = por %p31, %p32
      %p34 = scmp.ne.s32.totalorder %s23, %s26
      %p35 = scmp.eq.s32.totalorder %s18, 1
      %p36 = por %p34, %p35
      %p37 = scmp.ne.s32.totalorder %s26, %s27
      %p38 = scmp.eq.s32.totalorder %s18, 0
      %p39 = por %p37, %p38
      %p40 = scmp.ne.s32.totalorder %s26, %s27
      %p41 = scmp.eq.s32.totalorder %s19, 1
      %p42 = por %p40, %p41
      %p44 = scmp.ne.s32.totalorder %s27, %s43
      %p45 = scmp.eq.s32.totalorder %s19, 0
      %p46 = por %p44, %p45
      %s48 = sadd.s32 %s47, 1
      %p51 = scmp.eq.s32.totalorder %s13, 1
      %p52 = scmp.ne.s32.totalorder %s47, %s49
      %p53 = scmp.eq.s32.totalorder %s13, 0
      %p54 = por %p52, %p53
      %p55 = scmp.ne.s32.totalorder %s47, %s49
      %p56 = scmp.eq.s32.totalorder %s18, 1
      %p57 = por %p55, %p56
      %p58 = scmp.ne.s32.totalorder %s49, %s50
      %p59 = scmp.eq.s32.totalorder %s18, 0
      %p60 = por %p58, %p59
      %p61 = scmp.ne.s32.totalorder %s49, %s50
      %p62 = scmp.eq.s32.totalorder %s19, 1
      %p63 = por %p61, %p62
      %p65 = scmp.ne.s32.totalorder %s50, %s64
      %p66 = scmp.eq.s32.totalorder %s19, 0
      %p67 = por %p65, %p66
      %s69 = sadd.s32 %s68, 1
      %p72 = scmp.eq.s32.totalorder %s13, 1
      %p73 = scmp.ne.s32.totalorder %s68, %s70
      %p74 = scmp.eq.s32.totalorder %s13, 0
      %p75 = por %p73, %p74
      %p76 = scmp.ne.s32.totalorder %s68, %s70
      %p77 = scmp.eq.s32.totalorder %s18, 1
      %p78 = por %p76, %p77
      %p79 = scmp.ne.s32.totalorder %s70, %s71
      %p80 = scmp.eq.s32.totalorder %s18, 0
      %p81 = por %p79, %p80
      %p82 = scmp.ne.s32.totalorder %s70, %s71
      %p83 = scmp.eq.s32.totalorder %s19, 1
      %p84 = por %p82, %p83
      %p86 = scmp.ne.s32.totalorder %s71, %s85
      %p87 = scmp.eq.s32.totalorder %s19, 0
      %p88 = por %p86, %p87
      %s89 = ssub.s32 %s13, %s20
      %p90 = scmp.eq.s32.totalorder %s89, 0
      %s92 = sadd.s32 %s91, 1
      %s93 = scalar_select %p90, %s91, %s92
      %p96 = pneg %p90
      %p97 = scmp.eq.s32.totalorder %s13, 1
      %p98 = por %p96, %p97
      %p99 = scmp.ne.s32.totalorder %s91, %s94
      %p100 = scmp.eq.s32.totalorder %s13, 0
      %p101 = por %p99, %p100
      %p102 = scmp.ne.s32.totalorder %s91, %s94
      %p103 = scmp.eq.s32.totalorder %s18, 1
      %p104 = por %p102, %p103
      %p105 = scmp.ne.s32.totalorder %s94, %s95
      %p106 = scmp.eq.s32.totalorder %s18, 0
      %p107 = por %p105, %p106
      %p108 = scmp.ne.s32.totalorder %s94, %s95
      %p109 = scmp.eq.s32.totalorder %s19, 1
      %p110 = por %p108, %p109
      %p112 = scmp.ne.s32.totalorder %s95, %s111
      %p113 = scmp.eq.s32.totalorder %s19, 0
      %p114 = por %p112, %p113
      %p115 = scmp.le.s32.totalorder 1, %s13
      %p116 = scmp.lt.s32.totalorder %s13, 3
      %p117 = pnand %p115, %p116
      %p118 = pneg %p117
      // Predicated region
      $region9: #{tpu_custom_call.1} parent=5 // pred_check
        _
      $region10: #{tpu_custom_call.1} parent=5 // pred_check_branch
        %120 = sbr.rel (%p117) target = $region12
      $region11: #{tpu_custom_call.1} parent=5 // pred_region
        %s121 = ssub.s32 %s13, 1
        // Predicated region
        $region13: #{tpu_custom_call.1} parent=11 // pred_check
          %p122 = pneg %p60
        $region14: #{tpu_custom_call.1} parent=11 // pred_check_branch
          %124 = sbr.rel (%p122) target = $region16
        $region15: #{tpu_custom_call.1} parent=11 // pred_region
          %s126 = ssub.s32 2048, 2048
          %127 = vsyncadd [#allocation5], %s126
          %s128 = sshll.u32 [#allocation4], 4
          %s129 = int_to_ptr.vmem [resolvable:$true] %s128
          %134 = dma.hbm_to_vmem [thread:$0]  %s1, 2048, %s129, [#allocation5], 64, 64, 4
        $region16: #{tpu_custom_call.1} parent=11 // pred_fallthru
          _
        // Predicated region
        $region17: #{tpu_custom_call.1} parent=11 // pred_check
          %p135 = pneg %p81
        $region18: #{tpu_custom_call.1} parent=11 // pred_check_branch
          %137 = sbr.rel (%p135) target = $region20
        $region19: #{tpu_custom_call.1} parent=11 // pred_region
          %s139 = ssub.s32 128, 128
          %140 = vsyncadd [#allocation5], %s139
          %s142 = sshll.u32 [#allocation6], 4
          %s143 = int_to_ptr.vmem [resolvable:$true] %s142
          %145 = dma.hbm_to_vmem [thread:$0]  %s2, 128, %s143, [#allocation5]
        $region20: #{tpu_custom_call.1} parent=11 // pred_fallthru
          _
      $region12: #{tpu_custom_call.1} parent=5 // pred_fallthru
        _
      %p146 = scmp.lt.s32.totalorder %s13, 2
      // Predicated region
      $region21: #{tpu_custom_call.1} parent=5 // pred_check
        %p147 = pneg %p146
      $region22: #{tpu_custom_call.1} parent=5 // pred_check_branch
        %149 = sbr.rel (%p147) target = $region24
      $region23: #{tpu_custom_call.1} parent=5 // pred_region
        // Predicated region
        $region25: #{tpu_custom_call.1} parent=23 // pred_check
          %p150 = pneg %p33
        $region26: #{tpu_custom_call.1} parent=23 // pred_check_branch
          %152 = sbr.rel (%p150) target = $region28
        $region27: #{tpu_custom_call.1} parent=23 // pred_region
          %s153 = sand.u32 %s23, 1
          %s154 = scalar_lea.sflag [#allocation3], %s153
          %s155 = sand.u32 %s23, 1
          %s156 = smul.addr %s155, 4
          %s157 = scalar_lea.vmem [#allocation2], %s156
          %s159 = ssub.s32 64, 64
          %160 = vsyncadd %s154, %s159
          %s161 = smul.addr %s13, 2
          %s162 = smul.addr %s161, 32
          %s163 = scalar_lea.hbm %s0, %s162
          %s165 = sshll.u32 %s157, 4
          %s166 = int_to_ptr.vmem [resolvable:$true] %s165
          %168 = dma.hbm_to_vmem [thread:$0]  %s163, 64, %s166, %s154
        $region28: #{tpu_custom_call.1} parent=23 // pred_fallthru
          _
      $region24: #{tpu_custom_call.1} parent=5 // pred_fallthru
        _
      %p169 = scmp.le.s32.totalorder 1, %s13
      %p170 = scmp.lt.s32.totalorder %s13, 3
      %p171 = pnand %p169, %p170
      %p172 = pneg %p171
      // Predicated region
      $region29: #{tpu_custom_call.1} parent=5 // pred_check
        _
      $region30: #{tpu_custom_call.1} parent=5 // pred_check_branch
        %174 = sbr.rel (%p171) target = $region32
      $region31: #{tpu_custom_call.1} parent=5 // pred_region
        %s175 = ssub.s32 %s13, 1
        %s176 = sand.u32 %s26, 1
        %s177 = scalar_lea.sflag [#allocation3], %s176
        %s178 = sand.u32 %s26, 1
        %s179 = smul.addr %s178, 4
        %s180 = scalar_lea.vmem [#allocation2], %s179
        // Predicated region
        $region33: #{tpu_custom_call.1} parent=31 // pred_check
          %p181 = pneg %p39
        $region34: #{tpu_custom_call.1} parent=31 // pred_check_branch
          %183 = sbr.rel (%p181) target = $region36
        $region35: #{tpu_custom_call.1} parent=31 // pred_region
          %184 = dma.done %s177, 64
        $region36: #{tpu_custom_call.1} parent=31 // pred_fallthru
          _
        // Predicated region
        $region37: #{tpu_custom_call.1} parent=31 // pred_check
          %p185 = pneg %p60
        $region38: #{tpu_custom_call.1} parent=31 // pred_check_branch
          %187 = sbr.rel (%p185) target = $region40
        $region39: #{tpu_custom_call.1} parent=31 // pred_region
          %188 = dma.done [#allocation5], 2048
        $region40: #{tpu_custom_call.1} parent=31 // pred_fallthru
          _
        // Predicated region
        $region41: #{tpu_custom_call.1} parent=31 // pred_check
          %p189 = pneg %p81
        $region42: #{tpu_custom_call.1} parent=31 // pred_check_branch
          %191 = sbr.rel (%p189) target = $region44
        $region43: #{tpu_custom_call.1} parent=31 // pred_region
          %192 = dma.done [#allocation5], 128
        $region44: #{tpu_custom_call.1} parent=31 // pred_fallthru
          _
        %s193 = sand.u32 %s26, 1
        %s194 = scalar_lea.sflag [#allocation3], %s193
        %s195 = sand.u32 %s26, 1
        %s196 = smul.addr %s195, 4
        %s197 = scalar_lea.vmem [#allocation2], %s196
        %p198 = pneg %p39
        %p199 = pneg %p36
        %p200 = pneg %p60
        %p201 = pneg %p57
        %p202 = pneg %p81
        %p203 = pneg %p78
        %p204 = pneg %p107
        %p205 = pneg %p104
        %p206 = scmp.lt.s32.totalorder %s18, 1
        %s207 = scalar_select %p206, %s18, 1
        %s208 = smul.addr %s207, 8
        %s209 = scalar_lea.vmem %s3, %s208
        %p210 = scmp.lt.s32.totalorder %s18, 1
        %s211 = scalar_select %p210, %s18, 1
        %s212 = smul.addr %s211, 8
        %s213 = scalar_lea.vmem %s3, %s212
        %v215 = vld [vmem:[#allocation6] sm:$0x1f]
        %v216 = vld [vmem:[%s180] sm:$0xf]
        %v217 = vld [vmem:[#allocation4] sm:$0xf]
        %v218 = vld [vmem:[#allocation4 + $0x4] sm:$0xf]
        %v219 = vld [vmem:[#allocation4 + $0x8] sm:$0xf]
        %v220 = vld [vmem:[#allocation4 + $0xc] sm:$0xf]
        %v221 = vld [vmem:[#allocation4 + $0x10] sm:$0xf]
        %v222 = vld [vmem:[#allocation4 + $0x14] sm:$0xf]
        %v223 = vld [vmem:[#allocation4 + $0x18] sm:$0xf]
        %v224 = vld [vmem:[#allocation4 + $0x1c] sm:$0xf]
        %v225 = vld [vmem:[#allocation4 + $0x20] sm:$0xf]
        %v226 = vld [vmem:[#allocation4 + $0x24] sm:$0xf]
        %v227 = vld [vmem:[#allocation4 + $0x28] sm:$0xf]
        %v228 = vld [vmem:[#allocation4 + $0x2c] sm:$0xf]
        %v229 = vld [vmem:[#allocation4 + $0x30] sm:$0xf]
        %v230 = vld [vmem:[#allocation4 + $0x34] sm:$0xf]
        %v231 = vld [vmem:[#allocation4 + $0x38] sm:$0xf]
        %v232 = vld [vmem:[#allocation4 + $0x3c] sm:$0xf]
        %v233 = vld [vmem:[#allocation4 + $0x40] sm:$0xf]
        %v234 = vld [vmem:[#allocation4 + $0x44] sm:$0xf]
        %v235 = vld [vmem:[#allocation4 + $0x48] sm:$0xf]
        %v236 = vld [vmem:[#allocation4 + $0x4c] sm:$0xf]
        %v237 = vld [vmem:[#allocation4 + $0x50] sm:$0xf]
        %v238 = vld [vmem:[#allocation4 + $0x54] sm:$0xf]
        %v239 = vld [vmem:[#allocation4 + $0x58] sm:$0xf]
        %v240 = vld [vmem:[#allocation4 + $0x5c] sm:$0xf]
        %v241 = vld [vmem:[#allocation4 + $0x60] sm:$0xf]
        %v242 = vld [vmem:[#allocation4 + $0x64] sm:$0xf]
        %v243 = vld [vmem:[#allocation4 + $0x68] sm:$0xf]
        %v244 = vld [vmem:[#allocation4 + $0x6c] sm:$0xf]
        %v245 = vld [vmem:[#allocation4 + $0x70] sm:$0xf]
        %v246 = vld [vmem:[#allocation4 + $0x74] sm:$0xf]
        %v247 = vld [vmem:[#allocation4 + $0x78] sm:$0xf]
        %v248 = vld [vmem:[#allocation4 + $0x7c] sm:$0xf]
        %v251 = vunpack.c.l.s4 1983009808
        %v252 = vunpack.c.0.s8 %v251
        %v253 = vlaneseq
        %v254 = vshrl.u32 %v253, 7
        %v255 = vsub.s32 %v252, %v254
        %v256 = vrot.slane %v216, %v255
        %v257 = vcombine.high %v256, %v256
        %v292 = vunpack.c.l.b16 %v217
        %v293 = vunpack.c.l.b16 %v218
        %v294 = vunpack.c.l.b16 %v219
        %v295 = vunpack.c.l.b16 %v220
        %v296 = vunpack.c.l.b16 %v221
        %v297 = vunpack.c.l.b16 %v222
        %v298 = vunpack.c.l.b16 %v223
        %v299 = vunpack.c.l.b16 %v224
        %v300 = vunpack.c.l.b16 %v225
        %v301 = vunpack.c.l.b16 %v226
        %v302 = vunpack.c.l.b16 %v227
        %v303 = vunpack.c.l.b16 %v228
        %v304 = vunpack.c.l.b16 %v229
        %v305 = vunpack.c.l.b16 %v230
        %v306 = vunpack.c.l.b16 %v231
        %v307 = vunpack.c.l.b16 %v232
        %v308 = vunpack.c.l.b16 %v233
        %v309 = vunpack.c.l.b16 %v234
        %v310 = vunpack.c.l.b16 %v235
        %v311 = vunpack.c.l.b16 %v236
        %v312 = vunpack.c.l.b16 %v237
        %v313 = vunpack.c.l.b16 %v238
        %v314 = vunpack.c.l.b16 %v239
        %v315 = vunpack.c.l.b16 %v240
        %v316 = vunpack.c.l.b16 %v241
        %v317 = vunpack.c.l.b16 %v242
        %v318 = vunpack.c.l.b16 %v243
        %v319 = vunpack.c.l.b16 %v244
        %v320 = vunpack.c.l.b16 %v245
        %v321 = vunpack.c.l.b16 %v246
        %v322 = vunpack.c.l.b16 %v247
        %v323 = vunpack.c.l.b16 %v248
        %v324 = vpack.c.b16 %v293, %v292
        %v325 = vpack.c.b16 %v295, %v294
        %v326 = vpack.c.b16 %v297, %v296
        %v327 = vpack.c.b16 %v299, %v298
        %v328 = vpack.c.b16 %v301, %v300
        %v329 = vpack.c.b16 %v303, %v302
        %v330 = vpack.c.b16 %v305, %v304
        %v331 = vpack.c.b16 %v307, %v306
        %v332 = vpack.c.b16 %v309, %v308
        %v333 = vpack.c.b16 %v311, %v310
        %v334 = vpack.c.b16 %v313, %v312
        %v335 = vpack.c.b16 %v315, %v314
        %v336 = vpack.c.b16 %v317, %v316
        %v337 = vpack.c.b16 %v319, %v318
        %v338 = vpack.c.b16 %v321, %v320
        %v339 = vpack.c.b16 %v323, %v322
        %v357 = vrot.slane %v215, 1
        %359 = vmatprep.subr.bf16.mxu0 0
        %360 = vmatpush1.bf16.msra.mxu0 %v324
        %361 = vmatprep.subr.bf16.mxu0 0
        %362 = vmatpush1.bf16.msra.mxu0 %v325
        %363 = vmatprep.subr.bf16.mxu0 0
        %364 = vmatpush1.bf16.msra.mxu0 %v326
        %365 = vmatprep.subr.bf16.mxu0 0
        %366 = vmatpush1.bf16.msra.mxu0 %v327
        %367 = vmatprep.subr.bf16.mxu0 0
        %368 = vmatpush1.bf16.msra.mxu0 %v328
        %369 = vmatprep.subr.bf16.mxu0 0
        %370 = vmatpush1.bf16.msra.mxu0 %v329
        %371 = vmatprep.subr.bf16.mxu0 0
        %372 = vmatpush1.bf16.msra.mxu0 %v330
        %373 = vmatprep.subr.bf16.mxu0 0
        %374 = vmatpush1.bf16.msra.mxu0 %v331
        %375 = vmatprep.subr.bf16.mxu0 0
        %376 = vmatpush1.bf16.msra.mxu0 %v332
        %377 = vmatprep.subr.bf16.mxu0 0
        %378 = vmatpush1.bf16.msra.mxu0 %v333
        %379 = vmatprep.subr.bf16.mxu0 0
        %380 = vmatpush1.bf16.msra.mxu0 %v334
        %381 = vmatprep.subr.bf16.mxu0 0
        %382 = vmatpush1.bf16.msra.mxu0 %v335
        %383 = vmatprep.subr.bf16.mxu0 0
        %384 = vmatpush1.bf16.msra.mxu0 %v336
        %385 = vmatprep.subr.bf16.mxu0 0
        %386 = vmatpush1.bf16.msra.mxu0 %v337
        %387 = vmatprep.subr.bf16.mxu0 0
        %388 = vmatpush1.bf16.msra.mxu0 %v338
        %389 = vmatprep.subr.bf16.mxu0 0
        %390 = vmatpush1.bf16.msra.mxu0 %v339
        %391 = vmatprep.mubr.bf16.mxu0 %v257
        %392 = vmatmul.mubr.bf16.gmra.mrb[0].mxu0 %v256
        %v393 = vpop.f32.mrb[0].mxu0
        %v394 = vadd.f32 %v357, %v393
        %v395 = vpop.f32.mrb[0].mxu0
        %v396 = vpop.f32.mrb[0].mxu0
        %v397 = vpop.f32.mrb[0].mxu0
        %398 = vdwg.mxu0
        %399 = vst [vmem:[%s213 + $0x1] sm:$0xf] %v394
        %400 = vst [vmem:[%s213] sm:$0x1] %v215
        %p401 = scmp.lt.s32.totalorder %s18, 1
        %s402 = scalar_select %p401, %s18, 1
        %s403 = smul.addr %s402, 8
        %s404 = scalar_lea.vmem %s3, %s403
        // Predicated region
        $region45: #{tpu_custom_call.1} parent=31 // pred_check
          %p405 = pneg %p104
        $region46: #{tpu_custom_call.1} parent=31 // pred_check_branch
          %407 = sbr.rel (%p405) target = $region48
        $region47: #{tpu_custom_call.1} parent=31 // pred_region
          _
        $region48: #{tpu_custom_call.1} parent=31 // pred_fallthru
          _
      $region32: #{tpu_custom_call.1} parent=5 // pred_fallthru
        _
      %p408 = scmp.le.s32.totalorder 2, %s13
      // Predicated region
      $region49: #{tpu_custom_call.1} parent=5 // pred_check
        %p409 = pneg %p408
      $region50: #{tpu_custom_call.1} parent=5 // pred_check_branch
        %411 = sbr.rel (%p409) target = $region52
      $region51: #{tpu_custom_call.1} parent=5 // pred_region
        %s412 = ssub.s32 %s13, 2
        // Predicated region
        $region53: #{tpu_custom_call.1} parent=51 // pred_check
          %p413 = pneg %p110
        $region54: #{tpu_custom_call.1} parent=51 // pred_check_branch
          %415 = sbr.rel (%p413) target = $region56
        $region55: #{tpu_custom_call.1} parent=51 // pred_region
          %p416 = scmp.lt.s32.totalorder %s19, 1
          %s417 = scalar_select %p416, %s19, 1
          %s418 = smul.addr %s417, 8
          %s419 = scalar_lea.vmem %s3, %s418
        $region56: #{tpu_custom_call.1} parent=51 // pred_fallthru
          _
      $region52: #{tpu_custom_call.1} parent=5 // pred_fallthru
        _
    $region6: #{tpu_custom_call.1} parent=1 // loop_footer
      %s17 = sadd.s32 1, %s13
    $region7: #{tpu_custom_call.1} parent=1 // loop_footer_branch
      %12 = sbr.rel target = $region3
    $region8: #{tpu_custom_call.1} parent=1 // loop_exit
      _
    %420 = vsyncpa [#allocation3], 1
    %s421 = scalar_lea.sflag [#allocation3], 1
    %422 = vsyncpa %s421, 1
    %423 = vsyncpa [#allocation5], 1

</llo_original>
